<compile_context>
chip_gen: v6e
topology: v6e:2x2x1
jax: 0.10.0
libtpu: 0.0.40
codegen_flags: <defaults>
</compile_context>

<pallas_src>
import jax
import jax.numpy as jnp
from jax.experimental import pallas as pl
from jax.experimental.pallas import tpu as pltpu


def dnn_forward_kernel(xt_ref, w1t_ref, b1_ref, w2t_ref, b2_ref, w3t_ref,
                       b3_ref, o_ref):
    """One TILE_N-wide column slab of the fused MLP (N on the lane axis)."""
    xt = xt_ref[...]            # (F=2, TILE_N)
    w1t = w1t_ref[...]          # (H, F=2)

    # Layer 1 (K=2 contraction): VPU broadcast-FMA outer product, keeps the
    # MXU free and avoids a starved 2-row MXU pass.
    h = (w1t[:, 0:1] * xt[0:1, :]
         + w1t[:, 1:2] * xt[1:2, :]
         + b1_ref[...])                                   # (H, TILE_N)
    h = jnp.tanh(h)

    # Layer 2: lane-dense MXU matmul (H,H) @ (H, TILE_N), f32 accumulate.
    h = jnp.dot(w2t_ref[...], h,
                preferred_element_type=jnp.float32) + b2_ref[...]
    h = jnp.tanh(h)                                       # (H, TILE_N)

    # Output layer: (1,H) @ (H, TILE_N) -> (1, TILE_N); lane-dense store.
    y = jnp.dot(w3t_ref[...], h,
                preferred_element_type=jnp.float32) + b3_ref[...]
    o_ref[...] = y.astype(o_ref.dtype)


def dnn_forward(x, params, *, tile_n=512):
    """Fused MLP forward pass.  x: [N, F] float32 -> [N, 1] float32."""
    w1, b1, w2, b2, w3, b3 = params
    n, f = x.shape
    hidden = w1.shape[1]

    # Pad N up to a tile multiple and transpose so N is the lane axis.
    n_pad = pl.cdiv(n, tile_n) * tile_n
    xt = jnp.zeros((f, n_pad), x.dtype).at[:, :n].set(x.T)

    # Transposed operands (column-major math: y = Wt @ xt + b).
    w1t = w1.T                              # (H, F)
    b1t = b1.reshape(hidden, 1)
    w2t = w2.T                              # (H, H)
    b2t = b2.reshape(hidden, 1)
    w3t = w3.T                              # (1, H)
    b3t = b3.reshape(1, 1)

    grid = (n_pad // tile_n,)
    const = lambda a: pl.BlockSpec(a.shape, lambda i: (0, 0))

    y_t = pl.pallas_call(
        dnn_forward_kernel,
        out_shape=jax.ShapeDtypeStruct((1, n_pad), jnp.float32),
        grid=grid,
        in_specs=[
            pl.BlockSpec((f, tile_n), lambda i: (0, i)),   # x tile (streamed)
            const(w1t), const(b1t),                        # weights resident
            const(w2t), const(b2t),
            const(w3t), const(b3t),
        ],
        out_specs=pl.BlockSpec((1, tile_n), lambda i: (0, i)),
        compiler_params=pltpu.CompilerParams(
            dimension_semantics=("parallel",)),
    )(xt, w1t, b1t, w2t, b2t, w3t, b3t)

    # Back to the torch convention: (N, 1).
    return y_t[0, :n].reshape(n, 1)


def init_params(key, in_dim=2, hidden=32, out_dim=1):
    """Deterministic Xavier-ish init for the 3-layer PINN MLP."""
    k1, k2, k3 = jax.random.split(key, 3)

    def lin(k, fan_in, fan_out):
        scale = jnp.sqrt(2.0 / (fan_in + fan_out)).astype(jnp.float32)
        w = jax.random.normal(k, (fan_in, fan_out), dtype=jnp.float32) * scale
        b = jnp.zeros((1, fan_out), dtype=jnp.float32)
        return w, b

    w1, b1 = lin(k1, in_dim, hidden)
    w2, b2 = lin(k2, hidden, hidden)
    w3, b3 = lin(k3, hidden, out_dim)
    return (w1, b1, w2, b2, w3, b3)


def reference_forward(x, params):
    """Plain-JAX reference (same math as torch.nn.Sequential of Linear/Tanh)."""
    w1, b1, w2, b2, w3, b3 = params
    h = jnp.tanh(x @ w1 + b1)
    h = jnp.tanh(h @ w2 + b2)
    return h @ w3 + b3


if __name__ == "__main__":
    key = jax.random.PRNGKey(0)
    k_param, k_x = jax.random.split(key)

    n_points, in_dim, hidden = 2048, 2, 32     # 4 grid steps at TILE_N=512
    params = init_params(k_param, in_dim=in_dim, hidden=hidden, out_dim=1)

    # x columns are [t, x] as used in DNN.loss_pde indexing.
    x = jax.random.uniform(k_x, (n_points, in_dim), dtype=jnp.float32)

    y = dnn_forward(x, params, tile_n=512)
    y = jax.block_until_ready(y)

    y_ref = reference_forward(x, params)
    assert y.shape == (n_points, 1)
    assert jnp.allclose(y, y_ref, atol=1e-4, rtol=1e-4)

    # TODO(synk): loss_pde / loss_operator need autograd-through-the-net
    # (double backward); only the forward pass is required here.
    print("KERNEL_OK")
</pallas_src>

<mosaic_0001>
module attributes {stable_mosaic.version = 11 : i64} {
  func.func @dnn_forward_kernel(%arg0: i32, %arg1: memref<2x512xf32, #tpu.memory_space<vmem>>, %arg2: memref<32x2xf32, #tpu.memory_space<vmem>>, %arg3: memref<32x1xf32, #tpu.memory_space<vmem>>, %arg4: memref<32x32xf32, #tpu.memory_space<vmem>>, %arg5: memref<32x1xf32, #tpu.memory_space<vmem>>, %arg6: memref<1x32xf32, #tpu.memory_space<vmem>>, %arg7: memref<1x1xf32, #tpu.memory_space<vmem>>, %arg8: memref<1x512xf32, #tpu.memory_space<vmem>>) attributes {dimension_semantics = [#tpu.dimension_semantics<parallel>], iteration_bounds = array<i64: 4>, scalar_prefetch = 0 : i64, scratch_operands = 0 : i64, tpu.core_type = #tpu.core_type<tc>, window_params = [{transform_indices = @transform_0, window_bounds = array<i64: 2, 512>}, {pipeline_mode = #tpu.pipeline_mode<synchronous>, transform_indices = @transform_1, window_bounds = array<i64: 32, 2>}, {pipeline_mode = #tpu.pipeline_mode<synchronous>, transform_indices = @transform_2, window_bounds = array<i64: 32, 1>}, {pipeline_mode = #tpu.pipeline_mode<synchronous>, transform_indices = @transform_3, window_bounds = array<i64: 32, 32>}, {pipeline_mode = #tpu.pipeline_mode<synchronous>, transform_indices = @transform_4, window_bounds = array<i64: 32, 1>}, {pipeline_mode = #tpu.pipeline_mode<synchronous>, transform_indices = @transform_5, window_bounds = array<i64: 1, 32>}, {pipeline_mode = #tpu.pipeline_mode<synchronous>, transform_indices = @transform_6, window_bounds = array<i64: 1, 1>}, {transform_indices = @transform_7, window_bounds = array<i64: 1, 512>}]} {
    %c0 = arith.constant 0 : index
    %c0_0 = arith.constant 0 : index
    %0 = vector.load %arg1[%c0, %c0_0] : memref<2x512xf32, #tpu.memory_space<vmem>>, vector<2x512xf32>
    %c0_1 = arith.constant 0 : index
    %c0_2 = arith.constant 0 : index
    %1 = vector.load %arg2[%c0_1, %c0_2] : memref<32x2xf32, #tpu.memory_space<vmem>>, vector<32x2xf32>
    %2 = vector.extract_strided_slice %1 {offsets = [0, 0], sizes = [32, 1], strides = [1, 1]} : vector<32x2xf32> to vector<32x1xf32>
    %3 = vector.extract_strided_slice %0 {offsets = [0, 0], sizes = [1, 512], strides = [1, 1]} : vector<2x512xf32> to vector<1x512xf32>
    %4 = vector.broadcast %2 : vector<32x1xf32> to vector<32x512xf32>
    %5 = vector.broadcast %3 : vector<1x512xf32> to vector<32x512xf32>
    %6 = arith.mulf %4, %5 : vector<32x512xf32>
    %7 = vector.extract_strided_slice %1 {offsets = [0, 1], sizes = [32, 1], strides = [1, 1]} : vector<32x2xf32> to vector<32x1xf32>
    %8 = vector.extract_strided_slice %0 {offsets = [1, 0], sizes = [1, 512], strides = [1, 1]} : vector<2x512xf32> to vector<1x512xf32>
    %9 = vector.broadcast %7 : vector<32x1xf32> to vector<32x512xf32>
    %10 = vector.broadcast %8 : vector<1x512xf32> to vector<32x512xf32>
    %11 = arith.mulf %9, %10 : vector<32x512xf32>
    %12 = arith.addf %6, %11 : vector<32x512xf32>
    %c0_3 = arith.constant 0 : index
    %c0_4 = arith.constant 0 : index
    %13 = vector.load %arg3[%c0_3, %c0_4] : memref<32x1xf32, #tpu.memory_space<vmem>>, vector<32x1xf32>
    %14 = vector.broadcast %13 : vector<32x1xf32> to vector<32x512xf32>
    %15 = arith.addf %12, %14 : vector<32x512xf32>
    %16 = math.tanh %15 : vector<32x512xf32>
    %c0_5 = arith.constant 0 : index
    %c0_6 = arith.constant 0 : index
    %17 = vector.load %arg4[%c0_5, %c0_6] : memref<32x32xf32, #tpu.memory_space<vmem>>, vector<32x32xf32>
    %cst = arith.constant dense<0.000000e+00> : vector<32x512xf32>
    %18 = tpu.matmul %17, %16, %cst {dimension_numbers = #tpu.dot_dimension_numbers<[1], [0], [0], [1], [0, 0, 1, 1], [], []>} : vector<32x32xf32>, vector<32x512xf32>, vector<32x512xf32> -> vector<32x512xf32>
    %c0_7 = arith.constant 0 : index
    %c0_8 = arith.constant 0 : index
    %19 = vector.load %arg5[%c0_7, %c0_8] : memref<32x1xf32, #tpu.memory_space<vmem>>, vector<32x1xf32>
    %20 = vector.broadcast %19 : vector<32x1xf32> to vector<32x512xf32>
    %21 = arith.addf %18, %20 : vector<32x512xf32>
    %22 = math.tanh %21 : vector<32x512xf32>
    %c0_9 = arith.constant 0 : index
    %c0_10 = arith.constant 0 : index
    %23 = vector.load %arg6[%c0_9, %c0_10] : memref<1x32xf32, #tpu.memory_space<vmem>>, vector<1x32xf32>
    %cst_11 = arith.constant dense<0.000000e+00> : vector<1x512xf32>
    %24 = tpu.matmul %23, %22, %cst_11 {dimension_numbers = #tpu.dot_dimension_numbers<[1], [0], [0], [1], [0, 0, 1, 1], [], []>} : vector<1x32xf32>, vector<32x512xf32>, vector<1x512xf32> -> vector<1x512xf32>
    %c0_12 = arith.constant 0 : index
    %c0_13 = arith.constant 0 : index
    %25 = vector.load %arg7[%c0_12, %c0_13] : memref<1x1xf32, #tpu.memory_space<vmem>>, vector<1x1xf32>
    %26 = vector.broadcast %25 : vector<1x1xf32> to vector<1x512xf32>
    %27 = arith.addf %24, %26 : vector<1x512xf32>
    %c0_14 = arith.constant 0 : index
    %c0_15 = arith.constant 0 : index
    %28 = vector.load %arg8[%c0_14, %c0_15] : memref<1x512xf32, #tpu.memory_space<vmem>>, vector<1x512xf32>
    tpu.vector_store %arg8[%c0_14, %c0_15], %27 {strides = array<i32>} : memref<1x512xf32, #tpu.memory_space<vmem>>, vector<1x512xf32>,
    return
  }
  func.func @transform_0(%arg0: i32) -> (i32, i32) {
    %c0_i32 = arith.constant 0 : i32
    %c0_i32_0 = arith.constant 0 : i32
    return %c0_i32, %arg0 : i32, i32
  }
  func.func @transform_1(%arg0: i32) -> (i32, i32) {
    %c0_i32 = arith.constant 0 : i32
    %c0_i32_0 = arith.constant 0 : i32
    %c0_i32_1 = arith.constant 0 : i32
    return %c0_i32, %c0_i32_0 : i32, i32
  }
  func.func @transform_2(%arg0: i32) -> (i32, i32) {
    %c0_i32 = arith.constant 0 : i32
    %c0_i32_0 = arith.constant 0 : i32
    %c0_i32_1 = arith.constant 0 : i32
    return %c0_i32, %c0_i32_0 : i32, i32
  }
  func.func @transform_3(%arg0: i32) -> (i32, i32) {
    %c0_i32 = arith.constant 0 : i32
    %c0_i32_0 = arith.constant 0 : i32
    %c0_i32_1 = arith.constant 0 : i32
    return %c0_i32, %c0_i32_0 : i32, i32
  }
  func.func @transform_4(%arg0: i32) -> (i32, i32) {
    %c0_i32 = arith.constant 0 : i32
    %c0_i32_0 = arith.constant 0 : i32
    %c0_i32_1 = arith.constant 0 : i32
    return %c0_i32, %c0_i32_0 : i32, i32
  }
  func.func @transform_5(%arg0: i32) -> (i32, i32) {
    %c0_i32 = arith.constant 0 : i32
    %c0_i32_0 = arith.constant 0 : i32
    %c0_i32_1 = arith.constant 0 : i32
    return %c0_i32, %c0_i32_0 : i32, i32
  }
  func.func @transform_6(%arg0: i32) -> (i32, i32) {
    %c0_i32 = arith.constant 0 : i32
    %c0_i32_0 = arith.constant 0 : i32
    %c0_i32_1 = arith.constant 0 : i32
    return %c0_i32, %c0_i32_0 : i32, i32
  }
  func.func @transform_7(%arg0: i32) -> (i32, i32) {
    %c0_i32 = arith.constant 0 : i32
    %c0_i32_0 = arith.constant 0 : i32
    return %c0_i32, %arg0 : i32, i32
  }
}

</mosaic_0001>

<llo_original>
// kernel: tpu_custom_call.1
$region0: #{tpu_custom_call.1}
  #allocation0 [shape = 'u32[]', space=smem, size = 0x4, offset = 0x4, fixed_abs, tag = 'smem constant byte address 0x4 - core index']
  #allocation1 [shape = 'u32[144,128]{1,0:T(1,128)}', space=vmem, size = 0x12000, scoped, tag = 'internal scratch']
  #allocation2 [shape = 'f32[1,1]{1,0:T(1,128)S(1)}', space=vmem, size = 0x200, scoped, tag = 'scoped memory for tpu_custom_call.1']
  %s0 = inlined_call_operand.vmem [shape: f32[2,2048], index: 0, kind: input, shape index: {}]
  %s1 = inlined_call_operand.vmem [shape: f32[32,2], index: 1, kind: input, shape index: {}]
  %s2 = inlined_call_operand.vmem [shape: f32[32,1], index: 2, kind: input, shape index: {}]
  %s3 = inlined_call_operand.vmem [shape: f32[32,32], index: 3, kind: input, shape index: {}]
  %s4 = inlined_call_operand.vmem [shape: f32[32,1], index: 4, kind: input, shape index: {}]
  %s5 = inlined_call_operand.vmem [shape: f32[1,32], index: 5, kind: input, shape index: {}]
  %s6 = inlined_call_operand.<no memory space> [shape: f32[1,1], index: 6, kind: input, shape index: {}]
  %s7 = inlined_call_operand.hbm [shape: f32[1,2048], index: 7, kind: output, shape index: {}]
  %s8 = sld [smem:[#allocation0]]
  $region61: #{tpu_custom_call.1} parent=0
    _
  %s10 = ssub.s32 1, %s8
  %s11 = scalar_select 0, %s10, %s8
  %v12 = vstv %s6
  %13 = vst [vmem:[#allocation2] sm:$0x1] %v12
  $region1: #{tpu_custom_call.1} parent=0
    #allocation3 [shape = 'u8[4096]{0}', space=vmem, size = 0x1000, scoped, tag = 'output window, operand 0']
    #allocation4 [shape = 's32[2]{0}', space=sflag, size = 0x8, scoped, tag = 'scoped memory for tpu_custom_call.1']
    %14 = vsyncpa [#allocation4], 0
    %s15 = scalar_lea.sflag [#allocation4], 1
    %16 = vsyncpa %s15, 0
    loop: start=0, step=1, limit=6
    $region2: #{tpu_custom_call.1} parent=1 // loop_pre_header
      _
    $region3: #{tpu_custom_call.1} parent=1 // loop_header
      %s18 = sphi 0, %s22
      %p19 = scmp.ge.s32.totalorder %s18, 6
      %s28 = sphi 0, %s30
      %s31 = sphi 0, %s28
      %s32 = sphi 0, %s31
      %s48 = sphi 0, %s32
      %s52 = sphi 0, %s52
      %s54 = sphi 0, %s52
      %s55 = sphi 0, %s54
      %s69 = sphi 0, %s55
      %s73 = sphi 0, %s73
      %s75 = sphi 0, %s73
      %s76 = sphi 0, %s75
      %s90 = sphi 0, %s76
      %s94 = sphi 0, %s94
      %s96 = sphi 0, %s94
      %s97 = sphi 0, %s96
      %s111 = sphi 0, %s97
      %s115 = sphi 0, %s115
      %s117 = sphi 0, %s115
      %s118 = sphi 0, %s117
      %s132 = sphi 0, %s118
      %s136 = sphi 0, %s136
      %s138 = sphi 0, %s136
      %s139 = sphi 0, %s138
      %s153 = sphi 0, %s139
      %s157 = sphi 0, %s157
      %s159 = sphi 0, %s157
      %s160 = sphi 0, %s159
      %s174 = sphi 0, %s160
      %s180 = sphi 0, %s182
      %s183 = sphi 0, %s180
      %s184 = sphi 0, %s183
      %s200 = sphi 0, %s184
    $region4: #{tpu_custom_call.1} parent=1 // loop_header_branch
      %21 = sbr.rel (%p19) target = $region8
    $region5: #{tpu_custom_call.1} parent=1 // loop_body
      %s23 = ssub.s32 %s18, 1
      %s24 = ssub.s32 %s18, 2
      %s25 = sadd.s32 %s18, 1
      %s26 = ssub.s32 %s18, %s25
      %p27 = scmp.eq.s32.totalorder %s26, 0
      %s29 = sadd.s32 %s28, 1
      %s30 = scalar_select %p27, %s28, %s29
      %p33 = pneg %p27
      %p34 = scmp.eq.s32.totalorder %s18, 3
      %p35 = por %p33, %p34
      %p36 = scmp.ne.s32.totalorder %s28, %s31
      %p37 = scmp.eq.s32.totalorder %s18, 0
      %p38 = por %p36, %p37
      %p39 = scmp.ne.s32.totalorder %s28, %s31
      %p40 = scmp.eq.s32.totalorder %s23, 3
      %p41 = por %p39, %p40
      %p42 = scmp.ne.s32.totalorder %s31, %s32
      %p43 = scmp.eq.s32.totalorder %s23, 0
      %p44 = por %p42, %p43
      %p45 = scmp.ne.s32.totalorder %s31, %s32
      %p46 = scmp.eq.s32.totalorder %s24, 3
      %p47 = por %p45, %p46
      %p49 = scmp.ne.s32.totalorder %s32, %s48
      %p50 = scmp.eq.s32.totalorder %s24, 0
      %p51 = por %p49, %p50
      %s53 = sadd.s32 %s52, 1
      %p56 = scmp.eq.s32.totalorder %s18, 3
      %p57 = scmp.ne.s32.totalorder %s52, %s54
      %p58 = scmp.eq.s32.totalorder %s18, 0
      %p59 = por %p57, %p58
      %p60 = scmp.ne.s32.totalorder %s52, %s54
      %p61 = scmp.eq.s32.totalorder %s23, 3
      %p62 = por %p60, %p61
      %p63 = scmp.ne.s32.totalorder %s54, %s55
      %p64 = scmp.eq.s32.totalorder %s23, 0
      %p65 = por %p63, %p64
      %p66 = scmp.ne.s32.totalorder %s54, %s55
      %p67 = scmp.eq.s32.totalorder %s24, 3
      %p68 = por %p66, %p67
      %p70 = scmp.ne.s32.totalorder %s55, %s69
      %p71 = scmp.eq.s32.totalorder %s24, 0
      %p72 = por %p70, %p71
      %s74 = sadd.s32 %s73, 1
      %p77 = scmp.eq.s32.totalorder %s18, 3
      %p78 = scmp.ne.s32.totalorder %s73, %s75
      %p79 = scmp.eq.s32.totalorder %s18, 0
      %p80 = por %p78, %p79
      %p81 = scmp.ne.s32.totalorder %s73, %s75
      %p82 = scmp.eq.s32.totalorder %s23, 3
      %p83 = por %p81, %p82
      %p84 = scmp.ne.s32.totalorder %s75, %s76
      %p85 = scmp.eq.s32.totalorder %s23, 0
      %p86 = por %p84, %p85
      %p87 = scmp.ne.s32.totalorder %s75, %s76
      %p88 = scmp.eq.s32.totalorder %s24, 3
      %p89 = por %p87, %p88
      %p91 = scmp.ne.s32.totalorder %s76, %s90
      %p92 = scmp.eq.s32.totalorder %s24, 0
      %p93 = por %p91, %p92
      %s95 = sadd.s32 %s94, 1
      %p98 = scmp.eq.s32.totalorder %s18, 3
      %p99 = scmp.ne.s32.totalorder %s94, %s96
      %p100 = scmp.eq.s32.totalorder %s18, 0
      %p101 = por %p99, %p100
      %p102 = scmp.ne.s32.totalorder %s94, %s96
      %p103 = scmp.eq.s32.totalorder %s23, 3
      %p104 = por %p102, %p103
      %p105 = scmp.ne.s32.totalorder %s96, %s97
      %p106 = scmp.eq.s32.totalorder %s23, 0
      %p107 = por %p105, %p106
      %p108 = scmp.ne.s32.totalorder %s96, %s97
      %p109 = scmp.eq.s32.totalorder %s24, 3
      %p110 = por %p108, %p109
      %p112 = scmp.ne.s32.totalorder %s97, %s111
      %p113 = scmp.eq.s32.totalorder %s24, 0
      %p114 = por %p112, %p113
      %s116 = sadd.s32 %s115, 1
      %p119 = scmp.eq.s32.totalorder %s18, 3
      %p120 = scmp.ne.s32.totalorder %s115, %s117
      %p121 = scmp.eq.s32.totalorder %s18, 0
      %p122 = por %p120, %p121
      %p123 = scmp.ne.s32.totalorder %s115, %s117
      %p124 = scmp.eq.s32.totalorder %s23, 3
      %p125 = por %p123, %p124
      %p126 = scmp.ne.s32.totalorder %s117, %s118
      %p127 = scmp.eq.s32.totalorder %s23, 0
      %p128 = por %p126, %p127
      %p129 = scmp.ne.s32.totalorder %s117, %s118
      %p130 = scmp.eq.s32.totalorder %s24, 3
      %p131 = por %p129, %p130
      %p133 = scmp.ne.s32.totalorder %s118, %s132
      %p134 = scmp.eq.s32.totalorder %s24, 0
      %p135 = por %p133, %p134
      %s137 = sadd.s32 %s136, 1
      %p140 = scmp.eq.s32.totalorder %s18, 3
      %p141 = scmp.ne.s32.totalorder %s136, %s138
      %p142 = scmp.eq.s32.totalorder %s18, 0
      %p143 = por %p141, %p142
      %p144 = scmp.ne.s32.totalorder %s136, %s138
      %p145 = scmp.eq.s32.totalorder %s23, 3
      %p146 = por %p144, %p145
      %p147 = scmp.ne.s32.totalorder %s138, %s139
      %p148 = scmp.eq.s32.totalorder %s23, 0
      %p149 = por %p147, %p148
      %p150 = scmp.ne.s32.totalorder %s138, %s139
      %p151 = scmp.eq.s32.totalorder %s24, 3
      %p152 = por %p150, %p151
      %p154 = scmp.ne.s32.totalorder %s139, %s153
      %p155 = scmp.eq.s32.totalorder %s24, 0
      %p156 = por %p154, %p155
      %s158 = sadd.s32 %s157, 1
      %p161 = scmp.eq.s32.totalorder %s18, 3
      %p162 = scmp.ne.s32.totalorder %s157, %s159
      %p163 = scmp.eq.s32.totalorder %s18, 0
      %p164 = por %p162, %p163
      %p165 = scmp.ne.s32.totalorder %s157, %s159
      %p166 = scmp.eq.s32.totalorder %s23, 3
      %p167 = por %p165, %p166
      %p168 = scmp.ne.s32.totalorder %s159, %s160
      %p169 = scmp.eq.s32.totalorder %s23, 0
      %p170 = por %p168, %p169
      %p171 = scmp.ne.s32.totalorder %s159, %s160
      %p172 = scmp.eq.s32.totalorder %s24, 3
      %p173 = por %p171, %p172
      %p175 = scmp.ne.s32.totalorder %s160, %s174
      %p176 = scmp.eq.s32.totalorder %s24, 0
      %p177 = por %p175, %p176
      %s178 = ssub.s32 %s18, %s25
      %p179 = scmp.eq.s32.totalorder %s178, 0
      %s181 = sadd.s32 %s180, 1
      %s182 = scalar_select %p179, %s180, %s181
      %p185 = pneg %p179
      %p186 = scmp.eq.s32.totalorder %s18, 3
      %p187 = por %p185, %p186
      %p188 = scmp.ne.s32.totalorder %s180, %s183
      %p189 = scmp.eq.s32.totalorder %s18, 0
      %p190 = por %p188, %p189
      %p191 = scmp.ne.s32.totalorder %s180, %s183
      %p192 = scmp.eq.s32.totalorder %s23, 3
      %p193 = por %p191, %p192
      %p194 = scmp.ne.s32.totalorder %s183, %s184
      %p195 = scmp.eq.s32.totalorder %s23, 0
      %p196 = por %p194, %p195
      %p197 = scmp.ne.s32.totalorder %s183, %s184
      %p198 = scmp.eq.s32.totalorder %s24, 3
      %p199 = por %p197, %p198
      %p201 = scmp.ne.s32.totalorder %s184, %s200
      %p202 = scmp.eq.s32.totalorder %s24, 0
      %p203 = por %p201, %p202
      %p204 = scmp.le.s32.totalorder 1, %s18
      %p205 = scmp.lt.s32.totalorder %s18, 5
      %p206 = pnand %p204, %p205
      %p207 = pneg %p206
      // Predicated region
      $region9: #{tpu_custom_call.1} parent=5 // pred_check
        _
      $region10: #{tpu_custom_call.1} parent=5 // pred_check_branch
        %209 = sbr.rel (%p206) target = $region12
      $region11: #{tpu_custom_call.1} parent=5 // pred_region
        %s210 = ssub.s32 %s18, 1
        // Predicated region
        $region13: #{tpu_custom_call.1} parent=11 // pred_check
          %p211 = pneg %p65
        $region14: #{tpu_custom_call.1} parent=11 // pred_check_branch
          %213 = sbr.rel (%p211) target = $region16
        $region15: #{tpu_custom_call.1} parent=11 // pred_region
          _
        $region16: #{tpu_custom_call.1} parent=11 // pred_fallthru
          _
        // Predicated region
        $region17: #{tpu_custom_call.1} parent=11 // pred_check
          %p214 = pneg %p86
        $region18: #{tpu_custom_call.1} parent=11 // pred_check_branch
          %216 = sbr.rel (%p214) target = $region20
        $region19: #{tpu_custom_call.1} parent=11 // pred_region
          _
        $region20: #{tpu_custom_call.1} parent=11 // pred_fallthru
          _
        // Predicated region
        $region21: #{tpu_custom_call.1} parent=11 // pred_check
          %p217 = pneg %p107
        $region22: #{tpu_custom_call.1} parent=11 // pred_check_branch
          %219 = sbr.rel (%p217) target = $region24
        $region23: #{tpu_custom_call.1} parent=11 // pred_region
          _
        $region24: #{tpu_custom_call.1} parent=11 // pred_fallthru
          _
        // Predicated region
        $region25: #{tpu_custom_call.1} parent=11 // pred_check
          %p220 = pneg %p128
        $region26: #{tpu_custom_call.1} parent=11 // pred_check_branch
          %222 = sbr.rel (%p220) target = $region28
        $region27: #{tpu_custom_call.1} parent=11 // pred_region
          _
        $region28: #{tpu_custom_call.1} parent=11 // pred_fallthru
          _
        // Predicated region
        $region29: #{tpu_custom_call.1} parent=11 // pred_check
          %p223 = pneg %p149
        $region30: #{tpu_custom_call.1} parent=11 // pred_check_branch
          %225 = sbr.rel (%p223) target = $region32
        $region31: #{tpu_custom_call.1} parent=11 // pred_region
          _
        $region32: #{tpu_custom_call.1} parent=11 // pred_fallthru
          _
        // Predicated region
        $region33: #{tpu_custom_call.1} parent=11 // pred_check
          %p226 = pneg %p170
        $region34: #{tpu_custom_call.1} parent=11 // pred_check_branch
          %228 = sbr.rel (%p226) target = $region36
        $region35: #{tpu_custom_call.1} parent=11 // pred_region
          _
        $region36: #{tpu_custom_call.1} parent=11 // pred_fallthru
          _
      $region12: #{tpu_custom_call.1} parent=5 // pred_fallthru
        _
      %p229 = scmp.lt.s32.totalorder %s18, 4
      // Predicated region
      $region37: #{tpu_custom_call.1} parent=5 // pred_check
        %p230 = pneg %p229
      $region38: #{tpu_custom_call.1} parent=5 // pred_check_branch
        %232 = sbr.rel (%p230) target = $region40
      $region39: #{tpu_custom_call.1} parent=5 // pred_region
        // Predicated region
        $region41: #{tpu_custom_call.1} parent=39 // pred_check
          %p233 = pneg %p38
        $region42: #{tpu_custom_call.1} parent=39 // pred_check_branch
          %235 = sbr.rel (%p233) target = $region44
        $region43: #{tpu_custom_call.1} parent=39 // pred_region
          %s236 = smul.u32 4, %s18
          %p237 = scmp.lt.s32.totalorder %s236, 15
          %s238 = scalar_select %p237, %s236, 15
          %s239 = smul.addr %s238, 2
          %s240 = scalar_lea.vmem %s0, %s239
          %s241 = smul.u32 4, %s18
        $region44: #{tpu_custom_call.1} parent=39 // pred_fallthru
          _
      $region40: #{tpu_custom_call.1} parent=5 // pred_fallthru
        _
      %p242 = scmp.le.s32.totalorder 1, %s18
      %p243 = scmp.lt.s32.totalorder %s18, 5
      %p244 = pnand %p242, %p243
      %p245 = pneg %p244
      // Predicated region
      $region45: #{tpu_custom_call.1} parent=5 // pred_check
        _
      $region46: #{tpu_custom_call.1} parent=5 // pred_check_branch
        %247 = sbr.rel (%p244) target = $region48
      $region47: #{tpu_custom_call.1} parent=5 // pred_region
        %s248 = ssub.s32 %s18, 1
        %s249 = smul.u32 4, %s23
        %p250 = scmp.lt.s32.totalorder %s249, 15
        %s251 = scalar_select %p250, %s249, 15
        %s252 = smul.addr %s251, 2
        %s253 = scalar_lea.vmem %s0, %s252
        %p254 = pneg %p44
        %p255 = pneg %p41
        %p256 = pneg %p65
        %p257 = pneg %p62
        %p258 = pneg %p86
        %p259 = pneg %p83
        %p260 = pneg %p107
        %p261 = pneg %p104
        %p262 = pneg %p128
        %p263 = pneg %p125
        %p264 = pneg %p149
        %p265 = pneg %p146
        %p266 = pneg %p170
        %p267 = pneg %p167
        %p268 = pneg %p196
        %p269 = pneg %p193
        %s270 = sand.u32 %s183, 1
        %s271 = scalar_lea.sflag [#allocation4], %s270
        %s272 = sand.u32 %s183, 1
        %s273 = smul.addr %s272, 4
        %s274 = scalar_lea.vmem [#allocation3], %s273
        %s275 = smul.u32 4, %s23
        %p276 = scmp.lt.s32.totalorder %s275, 15
        %s277 = scalar_select %p276, %s275, 15
        %s278 = smul.addr %s277, 2
        %s279 = scalar_lea.vmem %s0, %s278
        %s280 = smul.u32 4, %s23
        %s281 = smul.u32 4, %s23
        %v282 = vld [vmem:[%s279] sm:$0xff]
        %v283 = vld [vmem:[%s1] sm:$0xff]
        %v284 = vld [vmem:[%s1 + $0x8] sm:$0xff]
        %v285 = vld [vmem:[%s1 + $0x10] sm:$0xff]
        %v286 = vld [vmem:[%s1 + $0x18] sm:$0xff]
        %288 = vset.pattern.permute.xlu0 0
        %289 = vperm.xlu0 %288, %v283
        %v290 = vpop.permute.xlu0 %289
        %293 = vset.pattern.permute.xlu0 0
        %294 = vperm.xlu0 %293, %v284
        %v295 = vpop.permute.xlu0 %294
        %298 = vset.pattern.permute.xlu0 0
        %299 = vperm.xlu0 %298, %v285
        %v300 = vpop.permute.xlu0 %299
        %303 = vset.pattern.permute.xlu0 0
        %304 = vperm.xlu0 %303, %v286
        %v305 = vpop.permute.xlu0 %304
        %v308 = vlaneseq
        %v309 = vshrl.u32 %v308, 7
        %v310 = vsub.s32 0, %v309
        %v311 = vrot.slane %v282, %v310
        %v312 = vlaneseq
        %v313 = vshrl.u32 %v312, 7
        %v314 = vsub.s32 2, %v313
        %v315 = vrot.slane %v282, %v314
        %v316 = vlaneseq
        %v317 = vshrl.u32 %v316, 7
        %v318 = vsub.s32 4, %v317
        %v319 = vrot.slane %v282, %v318
        %v320 = vlaneseq
        %v321 = vshrl.u32 %v320, 7
        %v322 = vsub.s32 6, %v321
        %v323 = vrot.slane %v282, %v322
        %v328 = vlaneseq
        %v329 = vshrl.u32 %v328, 7
        %v330 = vsub.s32 0, %v329
        %v331 = vrot.slane %v311, %v330
        %v332 = vlaneseq
        %v333 = vshrl.u32 %v332, 7
        %v334 = vsub.s32 0, %v333
        %v335 = vrot.slane %v315, %v334
        %v336 = vlaneseq
        %v337 = vshrl.u32 %v336, 7
        %v338 = vsub.s32 0, %v337
        %v339 = vrot.slane %v319, %v338
        %v340 = vlaneseq
        %v341 = vshrl.u32 %v340, 7
        %v342 = vsub.s32 0, %v341
        %v343 = vrot.slane %v323, %v342
        %v344 = vmul.f32 %v290, %v331
        %v345 = vmul.f32 %v290, %v335
        %v346 = vmul.f32 %v290, %v339
        %v347 = vmul.f32 %v290, %v343
        %v348 = vmul.f32 %v295, %v331
        %v349 = vmul.f32 %v295, %v335
        %v350 = vmul.f32 %v295, %v339
        %v351 = vmul.f32 %v295, %v343
        %v352 = vmul.f32 %v300, %v331
        %v353 = vmul.f32 %v300, %v335
        %v354 = vmul.f32 %v300, %v339
        %v355 = vmul.f32 %v300, %v343
        %v356 = vmul.f32 %v305, %v331
        %v357 = vmul.f32 %v305, %v335
        %v358 = vmul.f32 %v305, %v339
        %v359 = vmul.f32 %v305, %v343
        %360 = vset.pattern.permute.xlu0 1
        %361 = vperm.xlu0 %360, %v283
        %v362 = vpop.permute.xlu0 %361
        %364 = vset.pattern.permute.xlu0 1
        %365 = vperm.xlu0 %364, %v284
        %v366 = vpop.permute.xlu0 %365
        %368 = vset.pattern.permute.xlu0 1
        %369 = vperm.xlu0 %368, %v285
        %v370 = vpop.permute.xlu0 %369
        %372 = vset.pattern.permute.xlu0 1
        %373 = vperm.xlu0 %372, %v286
        %v374 = vpop.permute.xlu0 %373
        %v376 = vlaneseq
        %v377 = vshrl.u32 %v376, 7
        %v378 = vsub.s32 1, %v377
        %v379 = vrot.slane %v282, %v378
        %v380 = vlaneseq
        %v381 = vshrl.u32 %v380, 7
        %v382 = vsub.s32 3, %v381
        %v383 = vrot.slane %v282, %v382
        %v384 = vlaneseq
        %v385 = vshrl.u32 %v384, 7
        %v386 = vsub.s32 5, %v385
        %v387 = vrot.slane %v282, %v386
        %v388 = vlaneseq
        %v389 = vshrl.u32 %v388, 7
        %v390 = vsub.s32 7, %v389
        %v391 = vrot.slane %v282, %v390
        %v396 = vlaneseq
        %v397 = vshrl.u32 %v396, 7
        %v398 = vsub.s32 1, %v397
        %v399 = vrot.slane %v379, %v398
        %v400 = vlaneseq
        %v401 = vshrl.u32 %v400, 7
        %v402 = vsub.s32 1, %v401
        %v403 = vrot.slane %v383, %v402
        %v404 = vlaneseq
        %v405 = vshrl.u32 %v404, 7
        %v406 = vsub.s32 1, %v405
        %v407 = vrot.slane %v387, %v406
        %v408 = vlaneseq
        %v409 = vshrl.u32 %v408, 7
        %v410 = vsub.s32 1, %v409
        %v411 = vrot.slane %v391, %v410
        %v412 = vmul.f32 %v362, %v399
        %v413 = vmul.f32 %v362, %v403
        %v414 = vmul.f32 %v362, %v407
        %v415 = vmul.f32 %v362, %v411
        %v416 = vmul.f32 %v366, %v399
        %v417 = vmul.f32 %v366, %v403
        %v418 = vmul.f32 %v366, %v407
        %v419 = vmul.f32 %v366, %v411
        %v420 = vmul.f32 %v370, %v399
        %v421 = vmul.f32 %v370, %v403
        %v422 = vmul.f32 %v370, %v407
        %v423 = vmul.f32 %v370, %v411
        %v424 = vmul.f32 %v374, %v399
        %v425 = vmul.f32 %v374, %v403
        %v426 = vmul.f32 %v374, %v407
        %v427 = vmul.f32 %v374, %v411
        %v428 = vadd.f32 %v344, %v412
        %v429 = vadd.f32 %v345, %v413
        %v430 = vadd.f32 %v346, %v414
        %v431 = vadd.f32 %v347, %v415
        %v432 = vadd.f32 %v348, %v416
        %v433 = vadd.f32 %v349, %v417
        %v434 = vadd.f32 %v350, %v418
        %v435 = vadd.f32 %v351, %v419
        %v436 = vadd.f32 %v352, %v420
        %v437 = vadd.f32 %v353, %v421
        %v438 = vadd.f32 %v354, %v422
        %v439 = vadd.f32 %v355, %v423
        %v440 = vadd.f32 %v356, %v424
        %v441 = vadd.f32 %v357, %v425
        %v442 = vadd.f32 %v358, %v426
        %v443 = vadd.f32 %v359, %v427
        %v444 = vld [vmem:[%s2] sm:$0xff]
        %v445 = vld [vmem:[%s2 + $0x8] sm:$0xff]
        %v446 = vld [vmem:[%s2 + $0x10] sm:$0xff]
        %v447 = vld [vmem:[%s2 + $0x18] sm:$0xff]
        %449 = vset.pattern.permute.xlu0 0
        %450 = vperm.xlu0 %449, %v444
        %v451 = vpop.permute.xlu0 %450
        %454 = vset.pattern.permute.xlu0 0
        %455 = vperm.xlu0 %454, %v445
        %v456 = vpop.permute.xlu0 %455
        %459 = vset.pattern.permute.xlu0 0
        %460 = vperm.xlu0 %459, %v446
        %v461 = vpop.permute.xlu0 %460
        %464 = vset.pattern.permute.xlu0 0
        %465 = vperm.xlu0 %464, %v447
        %v466 = vpop.permute.xlu0 %465
        %v468 = vadd.f32 %v428, %v451
        %v469 = vadd.f32 %v429, %v451
        %v470 = vadd.f32 %v430, %v451
        %v471 = vadd.f32 %v431, %v451
        %v472 = vadd.f32 %v432, %v456
        %v473 = vadd.f32 %v433, %v456
        %v474 = vadd.f32 %v434, %v456
        %v475 = vadd.f32 %v435, %v456
        %v476 = vadd.f32 %v436, %v461
        %v477 = vadd.f32 %v437, %v461
        %v478 = vadd.f32 %v438, %v461
        %v479 = vadd.f32 %v439, %v461
        %v480 = vadd.f32 %v440, %v466
        %v481 = vadd.f32 %v441, %v466
        %v482 = vadd.f32 %v442, %v466
        %v483 = vadd.f32 %v443, %v466
        %v484 = vtanh.pop %v468
        %v485 = vtanh.pop %v469
        %v486 = vtanh.pop %v470
        %v487 = vtanh.pop %v471
        %v488 = vtanh.pop %v472
        %v489 = vtanh.pop %v473
        %v490 = vtanh.pop %v474
        %v491 = vtanh.pop %v475
        %v492 = vtanh.pop %v476
        %v493 = vtanh.pop %v477
        %v494 = vtanh.pop %v478
        %v495 = vtanh.pop %v479
        %v496 = vtanh.pop %v480
        %v497 = vtanh.pop %v481
        %v498 = vtanh.pop %v482
        %v499 = vtanh.pop %v483
        %v500 = vld [vmem:[%s3] sm:$0xff]
        %v501 = vld [vmem:[%s3 + $0x8] sm:$0xff]
        %v502 = vld [vmem:[%s3 + $0x10] sm:$0xff]
        %v503 = vld [vmem:[%s3 + $0x18] sm:$0xff]
        %v504 = vld [vmem:[%s4] sm:$0xff]
        %v505 = vld [vmem:[%s4 + $0x8] sm:$0xff]
        %v506 = vld [vmem:[%s4 + $0x10] sm:$0xff]
        %v507 = vld [vmem:[%s4 + $0x18] sm:$0xff]
        %509 = vset.pattern.permute.xlu0 0
        %510 = vperm.xlu0 %509, %v504
        %v511 = vpop.permute.xlu0 %510
        %514 = vset.pattern.permute.xlu0 0
        %515 = vperm.xlu0 %514, %v505
        %v516 = vpop.permute.xlu0 %515
        %519 = vset.pattern.permute.xlu0 0
        %520 = vperm.xlu0 %519, %v506
        %v521 = vpop.permute.xlu0 %520
        %524 = vset.pattern.permute.xlu0 0
        %525 = vperm.xlu0 %524, %v507
        %v526 = vpop.permute.xlu0 %525
        %vm528 = vcmask 261120
        %v530 = vsel %vm528, %v500, 0
        %v533 = vsel %vm528, %v501, 0
        %v536 = vsel %vm528, %v502, 0
        %v539 = vsel %vm528, %v503, 0
        %541 = vmatprep.subr.mxu0 0.0
        %542 = vmatpush1.msra.mxu0 0.0
        %543 = vmatprep.subr.mxu0 0.0
        %544 = vmatpush1.msra.mxu0 0.0
        %545 = vmatprep.subr.mxu0 0.0
        %546 = vmatpush1.msra.mxu0 0.0
        %547 = vmatprep.subr.mxu0 0.0
        %548 = vmatpush1.msra.mxu0 0.0
        %549 = vmatprep.subr.mxu0 0.0
        %550 = vmatpush1.msra.mxu0 0.0
        %551 = vmatprep.subr.mxu0 0.0
        %552 = vmatpush1.msra.mxu0 0.0
        %553 = vmatprep.subr.mxu0 0.0
        %554 = vmatpush1.msra.mxu0 0.0
        %555 = vmatprep.subr.mxu0 0.0
        %556 = vmatpush1.msra.mxu0 0.0
        %557 = vmatprep.subr.mxu0 0.0
        %558 = vmatpush1.msra.mxu0 0.0
        %559 = vmatprep.subr.mxu0 0.0
        %560 = vmatpush1.msra.mxu0 0.0
        %561 = vmatprep.subr.mxu0 0.0
        %562 = vmatpush1.msra.mxu0 0.0
        %563 = vmatprep.subr.mxu0 0.0
        %564 = vmatpush1.msra.mxu0 0.0
        %565 = vmatprep.subr.mxu0 %v497
        %566 = vmatpush1.msra.mxu0 %v496
        %567 = vmatprep.subr.mxu0 %v493
        %568 = vmatpush1.msra.mxu0 %v492
        %569 = vmatprep.subr.mxu0 %v489
        %570 = vmatpush1.msra.mxu0 %v488
        %571 = vmatprep.subr.mxu0 %v485
        %572 = vmatpush1.msra.mxu0 %v484
        %573 = vmatprep.subr.mxu0 0.0
        %574 = vmatpush2.msra.mxu0 0.0
        %575 = vmatprep.subr.mxu0 0.0
        %576 = vmatpush2.msra.mxu0 0.0
        %577 = vmatprep.subr.mxu0 0.0
        %578 = vmatpush2.msra.mxu0 0.0
        %579 = vmatprep.subr.mxu0 0.0
        %580 = vmatpush2.msra.mxu0 0.0
        %581 = vmatprep.subr.mxu0 0.0
        %582 = vmatpush2.msra.mxu0 0.0
        %583 = vmatprep.subr.mxu0 0.0
        %584 = vmatpush2.msra.mxu0 0.0
        %585 = vmatprep.subr.mxu0 0.0
        %586 = vmatpush2.msra.mxu0 0.0
        %587 = vmatprep.subr.mxu0 0.0
        %588 = vmatpush2.msra.mxu0 0.0
        %589 = vmatprep.subr.mxu0 0.0
        %590 = vmatpush2.msra.mxu0 0.0
        %591 = vmatprep.subr.mxu0 0.0
        %592 = vmatpush2.msra.mxu0 0.0
        %593 = vmatprep.subr.mxu0 0.0
        %594 = vmatpush2.msra.mxu0 0.0
        %595 = vmatprep.subr.mxu0 0.0
        %596 = vmatpush2.msra.mxu0 0.0
        %597 = vmatprep.subr.mxu0 0.0
        %598 = vmatpush2.msra.mxu0 0.0
        %599 = vmatprep.subr.mxu0 0.0
        %600 = vmatpush2.msra.mxu0 0.0
        %601 = vmatprep.subr.mxu0 0.0
        %602 = vmatpush2.msra.mxu0 0.0
        %603 = vmatprep.subr.mxu0 0.0
        %604 = vmatpush2.msra.mxu0 0.0
        %605 = vmatprep.mubr.f32.mxu0 0.0
        %606 = vmatmul.mubr.f32.gmra.mxu0 %v530
        %v607 = vpop.f32.mrf.mxu0
        %v608 = vadd.f32 %v511, %v607
        %v609 = vpop.f32.mrf.mxu0
        %v610 = vadd.f32 %v511, %v609
        %611 = vmatprep.mubr.f32.mxu0 0.0
        %612 = vmatmul.mubr.f32.gmra.mxu0 %v533
        %v613 = vpop.f32.mrf.mxu0
        %v614 = vadd.f32 %v516, %v613
        %v615 = vpop.f32.mrf.mxu0
        %v616 = vadd.f32 %v516, %v615
        %617 = vmatprep.mubr.f32.mxu0 0.0
        %618 = vmatmul.mubr.f32.gmra.mxu0 %v536
        %v619 = vpop.f32.mrf.mxu0
        %v620 = vadd.f32 %v521, %v619
        %v621 = vpop.f32.mrf.mxu0
        %v622 = vadd.f32 %v521, %v621
        %623 = vmatprep.mubr.f32.mxu0 0.0
        %624 = vmatmul.mubr.f32.gmra.mxu0 %v539
        %v625 = vpop.f32.mrf.mxu0
        %v626 = vadd.f32 %v526, %v625
        %v627 = vpop.f32.mrf.mxu0
        %v628 = vadd.f32 %v526, %v627
        %629 = vdwg.mxu0
        %630 = vmatprep.subr.mxu0 0.0
        %631 = vmatpush1.msra.mxu0 0.0
        %632 = vmatprep.subr.mxu0 0.0
        %633 = vmatpush1.msra.mxu0 0.0
        %634 = vmatprep.subr.mxu0 0.0
        %635 = vmatpush1.msra.mxu0 0.0
        %636 = vmatprep.subr.mxu0 0.0
        %637 = vmatpush1.msra.mxu0 0.0
        %638 = vmatprep.subr.mxu0 0.0
        %639 = vmatpush1.msra.mxu0 0.0
        %640 = vmatprep.subr.mxu0 0.0
        %641 = vmatpush1.msra.mxu0 0.0
        %642 = vmatprep.subr.mxu0 0.0
        %643 = vmatpush1.msra.mxu0 0.0
        %644 = vmatprep.subr.mxu0 0.0
        %645 = vmatpush1.msra.mxu0 0.0
        %646 = vmatprep.subr.mxu0 0.0
        %647 = vmatpush1.msra.mxu0 0.0
        %648 = vmatprep.subr.mxu0 0.0
        %649 = vmatpush1.msra.mxu0 0.0
        %650 = vmatprep.subr.mxu0 0.0
        %651 = vmatpush1.msra.mxu0 0.0
        %652 = vmatprep.subr.mxu0 0.0
        %653 = vmatpush1.msra.mxu0 0.0
        %654 = vmatprep.subr.mxu0 %v499
        %655 = vmatpush1.msra.mxu0 %v498
        %656 = vmatprep.subr.mxu0 %v495
        %657 = vmatpush1.msra.mxu0 %v494
        %658 = vmatprep.subr.mxu0 %v491
        %659 = vmatpush1.msra.mxu0 %v490
        %660 = vmatprep.subr.mxu0 %v487
        %661 = vmatpush1.msra.mxu0 %v486
        %662 = vmatprep.subr.mxu0 0.0
        %663 = vmatpush2.msra.mxu0 0.0
        %664 = vmatprep.subr.mxu0 0.0
        %665 = vmatpush2.msra.mxu0 0.0
        %666 = vmatprep.subr.mxu0 0.0
        %667 = vmatpush2.msra.mxu0 0.0
        %668 = vmatprep.subr.mxu0 0.0
        %669 = vmatpush2.msra.mxu0 0.0
        %670 = vmatprep.subr.mxu0 0.0
        %671 = vmatpush2.msra.mxu0 0.0
        %672 = vmatprep.subr.mxu0 0.0
        %673 = vmatpush2.msra.mxu0 0.0
        %674 = vmatprep.subr.mxu0 0.0
        %675 = vmatpush2.msra.mxu0 0.0
        %676 = vmatprep.subr.mxu0 0.0
        %677 = vmatpush2.msra.mxu0 0.0
        %678 = vmatprep.subr.mxu0 0.0
        %679 = vmatpush2.msra.mxu0 0.0
        %680 = vmatprep.subr.mxu0 0.0
        %681 = vmatpush2.msra.mxu0 0.0
        %682 = vmatprep.subr.mxu0 0.0
        %683 = vmatpush2.msra.mxu0 0.0
        %684 = vmatprep.subr.mxu0 0.0
        %685 = vmatpush2.msra.mxu0 0.0
        %686 = vmatprep.subr.mxu0 0.0
        %687 = vmatpush2.msra.mxu0 0.0
        %688 = vmatprep.subr.mxu0 0.0
        %689 = vmatpush2.msra.mxu0 0.0
        %690 = vmatprep.subr.mxu0 0.0
        %691 = vmatpush2.msra.mxu0 0.0
        %692 = vmatprep.subr.mxu0 0.0
        %693 = vmatpush2.msra.mxu0 0.0
        %694 = vmatprep.mubr.f32.mxu0 0.0
        %695 = vmatmul.mubr.f32.gmra.mxu0 %v530
        %v696 = vpop.f32.mrf.mxu0
        %v697 = vadd.f32 %v511, %v696
        %v698 = vpop.f32.mrf.mxu0
        %v699 = vadd.f32 %v511, %v698
        %700 = vmatprep.mubr.f32.mxu0 0.0
        %701 = vmatmul.mubr.f32.gmra.mxu0 %v533
        %v702 = vpop.f32.mrf.mxu0
        %v703 = vadd.f32 %v516, %v702
        %v704 = vpop.f32.mrf.mxu0
        %v705 = vadd.f32 %v516, %v704
        %706 = vmatprep.mubr.f32.mxu0 0.0
        %707 = vmatmul.mubr.f32.gmra.mxu0 %v536
        %v708 = vpop.f32.mrf.mxu0
        %v709 = vadd.f32 %v521, %v708
        %v710 = vpop.f32.mrf.mxu0
        %v711 = vadd.f32 %v521, %v710
        %712 = vmatprep.mubr.f32.mxu0 0.0
        %713 = vmatmul.mubr.f32.gmra.mxu0 %v539
        %v714 = vpop.f32.mrf.mxu0
        %v715 = vadd.f32 %v526, %v714
        %v716 = vpop.f32.mrf.mxu0
        %v717 = vadd.f32 %v526, %v716
        %718 = vdwg.mxu0
        %v719 = vtanh.pop %v608
        %v720 = vtanh.pop %v610
        %v721 = vtanh.pop %v697
        %v722 = vtanh.pop %v699
        %v723 = vtanh.pop %v614
        %v724 = vtanh.pop %v616
        %v725 = vtanh.pop %v703
        %v726 = vtanh.pop %v705
        %v727 = vtanh.pop %v620
        %v728 = vtanh.pop %v622
        %v729 = vtanh.pop %v709
        %v730 = vtanh.pop %v711
        %v731 = vtanh.pop %v626
        %v732 = vtanh.pop %v628
        %v733 = vtanh.pop %v715
        %v734 = vtanh.pop %v717
        %v735 = vld [vmem:[%s5] sm:$0x1]
        %v736 = vld [vmem:[#allocation2] sm:$0x1]
        %738 = vset.pattern.permute.xlu0 0
        %739 = vperm.xlu0 %738, %v736
        %v740 = vpop.permute.xlu0 %739
        %v742 = vlaneseq
        %v743 = vshrl.u32 %v742, 7
        %v744 = vsub.s32 0, %v743
        %v745 = vrot.slane %v740, %v744
        %v747 = vsel %vm528, %v735, 0
        %749 = vmatprep.subr.mxu0 0.0
        %750 = vmatpush1.msra.mxu0 0.0
        %751 = vmatprep.subr.mxu0 0.0
        %752 = vmatpush1.msra.mxu0 0.0
        %753 = vmatprep.subr.mxu0 0.0
        %754 = vmatpush1.msra.mxu0 0.0
        %755 = vmatprep.subr.mxu0 0.0
        %756 = vmatpush1.msra.mxu0 0.0
        %757 = vmatprep.subr.mxu0 0.0
        %758 = vmatpush1.msra.mxu0 0.0
        %759 = vmatprep.subr.mxu0 0.0
        %760 = vmatpush1.msra.mxu0 0.0
        %761 = vmatprep.subr.mxu0 0.0
        %762 = vmatpush1.msra.mxu0 0.0
        %763 = vmatprep.subr.mxu0 0.0
        %764 = vmatpush1.msra.mxu0 0.0
        %765 = vmatprep.subr.mxu0 0.0
        %766 = vmatpush1.msra.mxu0 0.0
        %767 = vmatprep.subr.mxu0 0.0
        %768 = vmatpush1.msra.mxu0 0.0
        %769 = vmatprep.subr.mxu0 0.0
        %770 = vmatpush1.msra.mxu0 0.0
        %771 = vmatprep.subr.mxu0 0.0
        %772 = vmatpush1.msra.mxu0 0.0
        %773 = vmatprep.subr.mxu0 %v732
        %774 = vmatpush1.msra.mxu0 %v731
        %775 = vmatprep.subr.mxu0 %v728
        %776 = vmatpush1.msra.mxu0 %v727
        %777 = vmatprep.subr.mxu0 %v724
        %778 = vmatpush1.msra.mxu0 %v723
        %779 = vmatprep.subr.mxu0 %v720
        %780 = vmatpush1.msra.mxu0 %v719
        %781 = vmatprep.subr.mxu0 0.0
        %782 = vmatpush2.msra.mxu0 0.0
        %783 = vmatprep.subr.mxu0 0.0
        %784 = vmatpush2.msra.mxu0 0.0
        %785 = vmatprep.subr.mxu0 0.0
        %786 = vmatpush2.msra.mxu0 0.0
        %787 = vmatprep.subr.mxu0 0.0
        %788 = vmatpush2.msra.mxu0 0.0
        %789 = vmatprep.subr.mxu0 0.0
        %790 = vmatpush2.msra.mxu0 0.0
        %791 = vmatprep.subr.mxu0 0.0
        %792 = vmatpush2.msra.mxu0 0.0
        %793 = vmatprep.subr.mxu0 0.0
        %794 = vmatpush2.msra.mxu0 0.0
        %795 = vmatprep.subr.mxu0 0.0
        %796 = vmatpush2.msra.mxu0 0.0
        %797 = vmatprep.subr.mxu0 0.0
        %798 = vmatpush2.msra.mxu0 0.0
        %799 = vmatprep.subr.mxu0 0.0
        %800 = vmatpush2.msra.mxu0 0.0
        %801 = vmatprep.subr.mxu0 0.0
        %802 = vmatpush2.msra.mxu0 0.0
        %803 = vmatprep.subr.mxu0 0.0
        %804 = vmatpush2.msra.mxu0 0.0
        %805 = vmatprep.subr.mxu0 0.0
        %806 = vmatpush2.msra.mxu0 0.0
        %807 = vmatprep.subr.mxu0 0.0
        %808 = vmatpush2.msra.mxu0 0.0
        %809 = vmatprep.subr.mxu0 0.0
        %810 = vmatpush2.msra.mxu0 0.0
        %811 = vmatprep.subr.mxu0 0.0
        %812 = vmatpush2.msra.mxu0 0.0
        %813 = vmatprep.mubr.f32.mxu0 0.0
        %814 = vmatmul.mubr.f32.gmra.mxu0 %v747
        %v815 = vpop.f32.mrf.mxu0
        %v816 = vadd.f32 %v745, %v815
        %v817 = vpop.f32.mrf.mxu0
        %v818 = vadd.f32 %v745, %v817
        %819 = vdwg.mxu0
        %820 = vmatprep.subr.mxu0 0.0
        %821 = vmatpush1.msra.mxu0 0.0
        %822 = vmatprep.subr.mxu0 0.0
        %823 = vmatpush1.msra.mxu0 0.0
        %824 = vmatprep.subr.mxu0 0.0
        %825 = vmatpush1.msra.mxu0 0.0
        %826 = vmatprep.subr.mxu0 0.0
        %827 = vmatpush1.msra.mxu0 0.0
        %828 = vmatprep.subr.mxu0 0.0
        %829 = vmatpush1.msra.mxu0 0.0
        %830 = vmatprep.subr.mxu0 0.0
        %831 = vmatpush1.msra.mxu0 0.0
        %832 = vmatprep.subr.mxu0 0.0
        %833 = vmatpush1.msra.mxu0 0.0
        %834 = vmatprep.subr.mxu0 0.0
        %835 = vmatpush1.msra.mxu0 0.0
        %836 = vmatprep.subr.mxu0 0.0
        %837 = vmatpush1.msra.mxu0 0.0
        %838 = vmatprep.subr.mxu0 0.0
        %839 = vmatpush1.msra.mxu0 0.0
        %840 = vmatprep.subr.mxu0 0.0
        %841 = vmatpush1.msra.mxu0 0.0
        %842 = vmatprep.subr.mxu0 0.0
        %843 = vmatpush1.msra.mxu0 0.0
        %844 = vmatprep.subr.mxu0 %v734
        %845 = vmatpush1.msra.mxu0 %v733
        %846 = vmatprep.subr.mxu0 %v730
        %847 = vmatpush1.msra.mxu0 %v729
        %848 = vmatprep.subr.mxu0 %v726
        %849 = vmatpush1.msra.mxu0 %v725
        %850 = vmatprep.subr.mxu0 %v722
        %851 = vmatpush1.msra.mxu0 %v721
        %852 = vmatprep.subr.mxu0 0.0
        %853 = vmatpush2.msra.mxu0 0.0
        %854 = vmatprep.subr.mxu0 0.0
        %855 = vmatpush2.msra.mxu0 0.0
        %856 = vmatprep.subr.mxu0 0.0
        %857 = vmatpush2.msra.mxu0 0.0
        %858 = vmatprep.subr.mxu0 0.0
        %859 = vmatpush2.msra.mxu0 0.0
        %860 = vmatprep.subr.mxu0 0.0
        %861 = vmatpush2.msra.mxu0 0.0
        %862 = vmatprep.subr.mxu0 0.0
        %863 = vmatpush2.msra.mxu0 0.0
        %864 = vmatprep.subr.mxu0 0.0
        %865 = vmatpush2.msra.mxu0 0.0
        %866 = vmatprep.subr.mxu0 0.0
        %867 = vmatpush2.msra.mxu0 0.0
        %868 = vmatprep.subr.mxu0 0.0
        %869 = vmatpush2.msra.mxu0 0.0
        %870 = vmatprep.subr.mxu0 0.0
        %871 = vmatpush2.msra.mxu0 0.0
        %872 = vmatprep.subr.mxu0 0.0
        %873 = vmatpush2.msra.mxu0 0.0
        %874 = vmatprep.subr.mxu0 0.0
        %875 = vmatpush2.msra.mxu0 0.0
        %876 = vmatprep.subr.mxu0 0.0
        %877 = vmatpush2.msra.mxu0 0.0
        %878 = vmatprep.subr.mxu0 0.0
        %879 = vmatpush2.msra.mxu0 0.0
        %880 = vmatprep.subr.mxu0 0.0
        %881 = vmatpush2.msra.mxu0 0.0
        %882 = vmatprep.subr.mxu0 0.0
        %883 = vmatpush2.msra.mxu0 0.0
        %884 = vmatprep.mubr.f32.mxu0 0.0
        %885 = vmatmul.mubr.f32.gmra.mxu0 %v747
        %v886 = vpop.f32.mrf.mxu0
        %v887 = vadd.f32 %v745, %v886
        %v888 = vpop.f32.mrf.mxu0
        %v889 = vadd.f32 %v745, %v888
        %890 = vdwg.mxu0
        %v895 = vcombine.low %v816, %v818
        %v896 = vcombine.low %v887, %v889
        %v898 = vunpack.c.l.s4 1966171168
        %v899 = vunpack.c.0.s8 %v898
        %v900 = vlaneseq
        %v901 = vshrl.u32 %v900, 7
        %v902 = vsub.s32 %v899, %v901
        %v903 = vrot.slane %v895, %v902
        %v905 = vunpack.c.l.s4 1966171168
        %v906 = vunpack.c.0.s8 %v905
        %v907 = vlaneseq
        %v908 = vshrl.u32 %v907, 7
        %v909 = vsub.s32 %v906, %v908
        %v910 = vrot.slane %v896, %v909
        %v911 = vcombine.low %v903, %v910
        %v913 = vunpack.c.l.s4 1966171168
        %v914 = vunpack.c.0.s8 %v913
        %v915 = vlaneseq
        %v916 = vshrl.u32 %v915, 7
        %v917 = vsub.s32 %v914, %v916
        %v918 = vrot.slane %v911, %v917
        %v920 = vlaneseq
        %vm921 = vcmp.ge.s32.totalorder %v920, 0
        %vm922 = vcmp.lt.s32.totalorder %v920, 512
        %vm923 = vmand %vm921, %vm922
        %924 = vst.msk [vmem:[%s274] sm:$0xf] %vm923, %v918
        %s925 = sand.u32 %s183, 1
        %s926 = scalar_lea.sflag [#allocation4], %s925
        %s927 = sand.u32 %s183, 1
        %s928 = smul.addr %s927, 4
        %s929 = scalar_lea.vmem [#allocation3], %s928
        // Predicated region
        $region49: #{tpu_custom_call.1} parent=47 // pred_check
          %p930 = pneg %p193
        $region50: #{tpu_custom_call.1} parent=47 // pred_check_branch
          %932 = sbr.rel (%p930) target = $region52
        $region51: #{tpu_custom_call.1} parent=47 // pred_region
          %s933 = smul.u32 4, %s23
          %s935 = ssub.s32 64, 64
          %936 = vsyncadd %s926, %s935
          %s937 = smul.addr %s933, 16
          %s938 = scalar_lea.hbm %s7, %s937
          %s940 = sshll.u32 %s929, 4
          %s941 = int_to_ptr.vmem [resolvable:$true] %s940
          %943 = dma.vmem_to_hbm [thread:$0]  %s941, 64, %s938, %s926
        $region52: #{tpu_custom_call.1} parent=47 // pred_fallthru
          _
      $region48: #{tpu_custom_call.1} parent=5 // pred_fallthru
        _
      %p944 = scmp.le.s32.totalorder 2, %s18
      // Predicated region
      $region53: #{tpu_custom_call.1} parent=5 // pred_check
        %p945 = pneg %p944
      $region54: #{tpu_custom_call.1} parent=5 // pred_check_branch
        %947 = sbr.rel (%p945) target = $region56
      $region55: #{tpu_custom_call.1} parent=5 // pred_region
        %s948 = ssub.s32 %s18, 2
        // Predicated region
        $region57: #{tpu_custom_call.1} parent=55 // pred_check
          %p949 = pneg %p199
        $region58: #{tpu_custom_call.1} parent=55 // pred_check_branch
          %951 = sbr.rel (%p949) target = $region60
        $region59: #{tpu_custom_call.1} parent=55 // pred_region
          %s952 = sand.u32 %s184, 1
          %s953 = scalar_lea.sflag [#allocation4], %s952
          %s954 = sand.u32 %s184, 1
          %s955 = smul.addr %s954, 4
          %s956 = scalar_lea.vmem [#allocation3], %s955
          %957 = dma.done %s953, 64
        $region60: #{tpu_custom_call.1} parent=55 // pred_fallthru
          _
      $region56: #{tpu_custom_call.1} parent=5 // pred_fallthru
        _
    $region6: #{tpu_custom_call.1} parent=1 // loop_footer
      %s22 = sadd.s32 1, %s18
    $region7: #{tpu_custom_call.1} parent=1 // loop_footer_branch
      %17 = sbr.rel target = $region3
    $region8: #{tpu_custom_call.1} parent=1 // loop_exit
      _
    %958 = vsyncpa [#allocation4], 1
    %s959 = scalar_lea.sflag [#allocation4], 1
    %960 = vsyncpa %s959, 1

</llo_original>
